<compile_context>
chip_gen: v5e
topology: v5e:2x2
jax: 0.10.0
libtpu: 0.0.40
codegen_flags: <defaults>
</compile_context>

<pallas_src>
import functools

import jax
import jax.numpy as jnp
from jax.experimental import pallas as pl
from jax.experimental.pallas import tpu as pltpu

LANE = 128


def _round_up(x, m):
    return ((x + m - 1) // m) * m


def textcnn_kernel(win_ref, wconv_ref, bconv_ref, validt_ref, fcw_ref, fcb_ref,
                   out_ref, *, t_pad):
    """Fused conv (all kernel sizes, one matmul) -> mask -> max-pool -> bias+ReLU -> fc."""
    win = win_ref[...]                                     # (TB*T_pad, F) bf16

    # One packed, lane-dense MXU matmul covering every kernel size.
    conv = jnp.dot(win, wconv_ref[...],
                   preferred_element_type=jnp.float32)     # (TB*T_pad, C) f32

    rows, c = conv.shape
    tb = rows // t_pad
    conv = conv.reshape(tb, t_pad, c)                      # split leading dim (layout no-op)

    # Mask time positions that are invalid for a channel's kernel-size group
    # (window past the sequence end, time padding, or lane padding).
    t_idx = jax.lax.broadcasted_iota(jnp.int32, (t_pad, c), 0)
    valid = t_idx < validt_ref[...]                        # (t_pad, C), bcast of (1, C)
    conv = jnp.where(valid, conv, -1e30)

    # Max-pool over time, then bias + ReLU (equivalent to relu-then-pool since
    # the bias is time-invariant and max/relu are monotone).
    pooled = jnp.max(conv, axis=1)                         # (TB, C)
    pooled = jnp.maximum(pooled + bconv_ref[...], 0.0)

    # Final classifier (tiny; kept in f32).
    scores = jnp.dot(pooled, fcw_ref[...],
                     preferred_element_type=jnp.float32) + fcb_ref[...]
    out_ref[...] = scores                                  # (TB, NC_pad) f32


def textcnn_forward(text, emb_table, conv_ws, conv_bs, fc_w, fc_b,
                    kernel_sizes, n_kernels, n_classes, block_b=8):
    kernel_sizes = tuple(int(s) for s in kernel_sizes)
    n_sizes = len(kernel_sizes)
    s_min, s_max = min(kernel_sizes), max(kernel_sizes)
    B, L = text.shape
    E = emb_table.shape[1]
    K = n_kernels
    T = L - s_min + 1                      # number of window positions (largest group)
    T_pad = _round_up(T, 8)                # sublane-aligned time extent
    F = s_max * E                          # packed window feature width
    C = n_sizes * K
    C_pad = _round_up(C, LANE)             # lane-dense conv channel dim
    NC_pad = _round_up(n_classes, LANE)    # lane-dense output dim

    TB = block_b
    B_pad = _round_up(max(B, TB), TB)

    # ---- XLA glue: embedding lookup + im2col (pure layout, no FLOPs) --------
    emb = jnp.take(emb_table, text, axis=0).astype(jnp.float32)   # (B, L, E)
    emb = jnp.pad(emb, ((0, 0), (0, s_max - s_min), (0, 0)))      # room for widest window
    widx = jnp.arange(T)[:, None] + jnp.arange(s_max)[None, :]    # (T, s_max)
    windows = emb[:, widx, :].reshape(B, T, F)                    # (B, T, F)
    windows = jnp.pad(windows, ((0, B_pad - B), (0, T_pad - T), (0, 0)))
    windows = windows.reshape(B_pad * T_pad, F).astype(jnp.bfloat16)

    # ---- pack conv weights/biases of all kernel sizes, pre-transposed -------
    w_packed = jnp.zeros((F, C_pad), jnp.float32)
    b_packed = jnp.zeros((1, C_pad), jnp.float32)
    valid_t = jnp.zeros((1, C_pad), jnp.int32)
    for g, (s, w, b) in enumerate(zip(kernel_sizes, conv_ws, conv_bs)):
        w2d = w.reshape(K, s * E)                                 # (K, s*E) PyTorch layout
        w_packed = w_packed.at[:s * E, g * K:(g + 1) * K].set(
            w2d.T.astype(jnp.float32))
        b_packed = b_packed.at[0, g * K:(g + 1) * K].set(b.astype(jnp.float32))
        valid_t = valid_t.at[0, g * K:(g + 1) * K].set(L - s + 1)
    w_packed = w_packed.astype(jnp.bfloat16)

    fc_w_t = jnp.zeros((C_pad, NC_pad), jnp.float32)
    fc_w_t = fc_w_t.at[:C, :n_classes].set(fc_w.T.astype(jnp.float32))
    fc_b_p = jnp.zeros((1, NC_pad), jnp.float32)
    fc_b_p = fc_b_p.at[0, :n_classes].set(fc_b.astype(jnp.float32))

    grid = (B_pad // TB,)
    const2 = lambda i: (0, 0)
    kernel = functools.partial(textcnn_kernel, t_pad=T_pad)

    out = pl.pallas_call(
        kernel,
        out_shape=jax.ShapeDtypeStruct((B_pad, NC_pad), jnp.float32),
        grid=grid,
        in_specs=[
            pl.BlockSpec((TB * T_pad, F), lambda i: (i, 0)),   # activation tile
            pl.BlockSpec((F, C_pad), const2),                  # packed conv weight
            pl.BlockSpec((1, C_pad), const2),                  # packed conv bias
            pl.BlockSpec((1, C_pad), const2),                  # per-channel valid length
            pl.BlockSpec((C_pad, NC_pad), const2),             # fc weight (pre-transposed)
            pl.BlockSpec((1, NC_pad), const2),                 # fc bias
        ],
        out_specs=pl.BlockSpec((TB, NC_pad), lambda i: (i, 0)),
        compiler_params=pltpu.CompilerParams(
            dimension_semantics=("parallel",),
            vmem_limit_bytes=32 * 1024 * 1024),
    )(windows, w_packed, b_packed, valid_t, fc_w_t, fc_b_p)

    return out[:B, :n_classes]


def ref_forward(text, emb_table, conv_ws, conv_bs, fc_w, fc_b, kernel_sizes):
    """Pure-JAX reference (rounds the conv-matmul operands to bf16 like the kernel)."""
    hp = jax.lax.Precision.HIGHEST
    emb = jnp.take(emb_table, text, axis=0).astype(jnp.float32)
    emb = emb.astype(jnp.bfloat16).astype(jnp.float32)
    B, L, E = emb.shape
    pooled = []
    for w, b, s in zip(conv_ws, conv_bs, kernel_sizes):
        w = w.reshape(-1, s * E).astype(jnp.bfloat16).astype(jnp.float32)
        T = L - s + 1
        wins = jnp.stack([emb[:, t:t + s, :].reshape(B, s * E)
                          for t in range(T)], axis=1)              # (B, T, s*E)
        conv = jnp.einsum('btf,kf->btk', wins, w, precision=hp) + b
        conv = jnp.maximum(conv, 0.0)
        pooled.append(jnp.max(conv, axis=1))
    flat = jnp.concatenate(pooled, axis=-1)
    return jnp.dot(flat, fc_w.T, precision=hp) + fc_b


if __name__ == "__main__":
    key = jax.random.PRNGKey(0)
    vocab_size, emb_size, word_pad_len = 50, 16, 12
    n_kernels, kernel_sizes, n_classes = 8, [2, 3, 4], 5
    batch = 10

    keys = jax.random.split(key, 4 + 2 * len(kernel_sizes))
    emb_table = 0.1 * jax.random.normal(keys[0], (vocab_size, emb_size), jnp.float32)
    text = jax.random.randint(keys[1], (batch, word_pad_len), 0, vocab_size)
    word_per_sentence = jnp.full((batch,), word_pad_len, jnp.int32)  # unused in forward

    conv_ws, conv_bs = [], []
    for i, s in enumerate(kernel_sizes):
        conv_ws.append(0.05 * jax.random.normal(
            keys[2 + 2 * i], (n_kernels, s * emb_size), jnp.float32))
        conv_bs.append(0.05 * jax.random.normal(
            keys[3 + 2 * i], (n_kernels,), jnp.float32))
    fc_w = 0.05 * jax.random.normal(
        keys[-2], (n_classes, len(kernel_sizes) * n_kernels), jnp.float32)
    fc_b = 0.05 * jax.random.normal(keys[-1], (n_classes,), jnp.float32)

    scores = textcnn_forward(text, emb_table, conv_ws, conv_bs, fc_w, fc_b,
                             kernel_sizes, n_kernels, n_classes, block_b=8)
    jax.block_until_ready(scores)

    expected = ref_forward(text, emb_table, conv_ws, conv_bs, fc_w, fc_b,
                           kernel_sizes)
    assert scores.shape == (batch, n_classes)
    err = jnp.max(jnp.abs(scores - expected))
    assert jnp.allclose(scores, expected, atol=1e-3, rtol=1e-3), err

    print("KERNEL_OK")
</pallas_src>

<mosaic_0001>
module attributes {stable_mosaic.version = 11 : i64} {
  func.func @textcnn_kernel(%arg0: i32, %arg1: memref<128x64xbf16, #tpu.memory_space<vmem>>, %arg2: memref<64x128xbf16, #tpu.memory_space<vmem>>, %arg3: memref<1x128xf32, #tpu.memory_space<vmem>>, %arg4: memref<1x128xi32, #tpu.memory_space<vmem>>, %arg5: memref<128x128xf32, #tpu.memory_space<vmem>>, %arg6: memref<1x128xf32, #tpu.memory_space<vmem>>, %arg7: memref<8x128xf32, #tpu.memory_space<vmem>>) attributes {dimension_semantics = [#tpu.dimension_semantics<parallel>], iteration_bounds = array<i64: 2>, scalar_prefetch = 0 : i64, scratch_operands = 0 : i64, tpu.core_type = #tpu.core_type<tc>, window_params = [{transform_indices = @transform_0, window_bounds = array<i64: 128, 64>}, {pipeline_mode = #tpu.pipeline_mode<synchronous>, transform_indices = @transform_1, window_bounds = array<i64: 64, 128>}, {pipeline_mode = #tpu.pipeline_mode<synchronous>, transform_indices = @transform_2, window_bounds = array<i64: 1, 128>}, {pipeline_mode = #tpu.pipeline_mode<synchronous>, transform_indices = @transform_3, window_bounds = array<i64: 1, 128>}, {pipeline_mode = #tpu.pipeline_mode<synchronous>, transform_indices = @transform_4, window_bounds = array<i64: 128, 128>}, {pipeline_mode = #tpu.pipeline_mode<synchronous>, transform_indices = @transform_5, window_bounds = array<i64: 1, 128>}, {transform_indices = @transform_6, window_bounds = array<i64: 8, 128>}]} {
    %c0 = arith.constant 0 : index
    %c0_0 = arith.constant 0 : index
    %0 = vector.load %arg1[%c0, %c0_0] : memref<128x64xbf16, #tpu.memory_space<vmem>>, vector<128x64xbf16>
    %c0_1 = arith.constant 0 : index
    %c0_2 = arith.constant 0 : index
    %1 = vector.load %arg2[%c0_1, %c0_2] : memref<64x128xbf16, #tpu.memory_space<vmem>>, vector<64x128xbf16>
    %cst = arith.constant dense<0.000000e+00> : vector<128x128xf32>
    %2 = tpu.matmul %0, %1, %cst {dimension_numbers = #tpu.dot_dimension_numbers<[1], [0], [0], [1], [0, 0, 1, 1], [], []>} : vector<128x64xbf16>, vector<64x128xbf16>, vector<128x128xf32> -> vector<128x128xf32>
    %3 = vector.shape_cast %2 : vector<128x128xf32> to vector<8x16x128xf32>
    %4 = tpu.iota {dimensions = array<i32: 0>} : vector<16x128xi32>
    %c0_3 = arith.constant 0 : index
    %c0_4 = arith.constant 0 : index
    %5 = vector.load %arg4[%c0_3, %c0_4] : memref<1x128xi32, #tpu.memory_space<vmem>>, vector<1x128xi32>
    %6 = vector.broadcast %5 : vector<1x128xi32> to vector<16x128xi32>
    %7 = arith.cmpi slt, %4, %6 : vector<16x128xi32>
    %cst_5 = arith.constant -1.000000e+30 : f32
    %8 = vector.shape_cast %7 : vector<16x128xi1> to vector<1x16x128xi1>
    %9 = vector.broadcast %8 : vector<1x16x128xi1> to vector<8x16x128xi1>
    %10 = vector.broadcast %cst_5 : f32 to vector<8x16x128xf32>
    %11 = arith.select %9, %3, %10 : vector<8x16x128xi1>, vector<8x16x128xf32>
    %cst_6 = arith.constant dense<0xFF800000> : vector<8x128xf32>
    %12 = vector.multi_reduction <maximumf>, %11, %cst_6 [1] : vector<8x16x128xf32> to vector<8x128xf32>
    %c0_7 = arith.constant 0 : index
    %c0_8 = arith.constant 0 : index
    %13 = vector.load %arg3[%c0_7, %c0_8] : memref<1x128xf32, #tpu.memory_space<vmem>>, vector<1x128xf32>
    %14 = vector.broadcast %13 : vector<1x128xf32> to vector<8x128xf32>
    %15 = arith.addf %12, %14 : vector<8x128xf32>
    %cst_9 = arith.constant 0.000000e+00 : f32
    %16 = vector.broadcast %cst_9 : f32 to vector<8x128xf32>
    %17 = arith.maximumf %15, %16 : vector<8x128xf32>
    %c0_10 = arith.constant 0 : index
    %c0_11 = arith.constant 0 : index
    %18 = vector.load %arg5[%c0_10, %c0_11] : memref<128x128xf32, #tpu.memory_space<vmem>>, vector<128x128xf32>
    %cst_12 = arith.constant dense<0.000000e+00> : vector<8x128xf32>
    %19 = tpu.matmul %17, %18, %cst_12 {dimension_numbers = #tpu.dot_dimension_numbers<[1], [0], [0], [1], [0, 0, 1, 1], [], []>} : vector<8x128xf32>, vector<128x128xf32>, vector<8x128xf32> -> vector<8x128xf32>
    %c0_13 = arith.constant 0 : index
    %c0_14 = arith.constant 0 : index
    %20 = vector.load %arg6[%c0_13, %c0_14] : memref<1x128xf32, #tpu.memory_space<vmem>>, vector<1x128xf32>
    %21 = vector.broadcast %20 : vector<1x128xf32> to vector<8x128xf32>
    %22 = arith.addf %19, %21 : vector<8x128xf32>
    %c0_15 = arith.constant 0 : index
    %c0_16 = arith.constant 0 : index
    %23 = vector.load %arg7[%c0_15, %c0_16] : memref<8x128xf32, #tpu.memory_space<vmem>>, vector<8x128xf32>
    tpu.vector_store %arg7[%c0_15, %c0_16], %22 {strides = array<i32>} : memref<8x128xf32, #tpu.memory_space<vmem>>, vector<8x128xf32>,
    return
  }
  func.func @transform_0(%arg0: i32) -> (i32, i32) {
    %c0_i32 = arith.constant 0 : i32
    %c0_i32_0 = arith.constant 0 : i32
    return %arg0, %c0_i32 : i32, i32
  }
  func.func @transform_1(%arg0: i32) -> (i32, i32) {
    %c0_i32 = arith.constant 0 : i32
    %c0_i32_0 = arith.constant 0 : i32
    %c0_i32_1 = arith.constant 0 : i32
    return %c0_i32, %c0_i32_0 : i32, i32
  }
  func.func @transform_2(%arg0: i32) -> (i32, i32) {
    %c0_i32 = arith.constant 0 : i32
    %c0_i32_0 = arith.constant 0 : i32
    %c0_i32_1 = arith.constant 0 : i32
    return %c0_i32, %c0_i32_0 : i32, i32
  }
  func.func @transform_3(%arg0: i32) -> (i32, i32) {
    %c0_i32 = arith.constant 0 : i32
    %c0_i32_0 = arith.constant 0 : i32
    %c0_i32_1 = arith.constant 0 : i32
    return %c0_i32, %c0_i32_0 : i32, i32
  }
  func.func @transform_4(%arg0: i32) -> (i32, i32) {
    %c0_i32 = arith.constant 0 : i32
    %c0_i32_0 = arith.constant 0 : i32
    %c0_i32_1 = arith.constant 0 : i32
    return %c0_i32, %c0_i32_0 : i32, i32
  }
  func.func @transform_5(%arg0: i32) -> (i32, i32) {
    %c0_i32 = arith.constant 0 : i32
    %c0_i32_0 = arith.constant 0 : i32
    %c0_i32_1 = arith.constant 0 : i32
    return %c0_i32, %c0_i32_0 : i32, i32
  }
  func.func @transform_6(%arg0: i32) -> (i32, i32) {
    %c0_i32 = arith.constant 0 : i32
    %c0_i32_0 = arith.constant 0 : i32
    return %arg0, %c0_i32 : i32, i32
  }
}

</mosaic_0001>

<llo_original>
// kernel: tpu_custom_call.1
$region0: #{tpu_custom_call.1}
  #allocation0 [shape = 'u32[]', space=smem, size = 0x4, offset = 0x4, fixed_abs, tag = 'smem constant byte address 0x4 - core index']
  #allocation1 [shape = 'u32[72,128]{1,0:T(1,128)}', space=vmem, size = 0x9000, scoped, tag = 'internal scratch']
  %s0 = inlined_call_operand.vmem [shape: bf16[256,64], index: 0, kind: input, shape index: {}]
  %s1 = inlined_call_operand.vmem [shape: bf16[64,128], index: 1, kind: input, shape index: {}]
  %s2 = inlined_call_operand.vmem [shape: f32[1,128], index: 2, kind: input, shape index: {}]
  %s3 = inlined_call_operand.vmem [shape: s32[1,128], index: 3, kind: input, shape index: {}]
  %s4 = inlined_call_operand.vmem [shape: f32[128,128], index: 4, kind: input, shape index: {}]
  %s5 = inlined_call_operand.vmem [shape: f32[1,128], index: 5, kind: input, shape index: {}]
  %s6 = inlined_call_operand.hbm [shape: f32[16,128], index: 6, kind: output, shape index: {}]
  %s7 = sld [smem:[#allocation0]]
  $region57: #{tpu_custom_call.1} parent=0
    _
  %s9 = ssub.s32 1, %s7
  %s10 = scalar_select 0, %s9, %s7
  $region1: #{tpu_custom_call.1} parent=0
    #allocation2 [shape = 'u8[8192]{0}', space=vmem, size = 0x2000, scoped, tag = 'output window, operand 0']
    #allocation3 [shape = 's32[2]{0}', space=sflag, size = 0x8, scoped, tag = 'scoped memory for tpu_custom_call.1']
    %11 = vsyncpa [#allocation3], 0
    %s12 = scalar_lea.sflag [#allocation3], 1
    %13 = vsyncpa %s12, 0
    loop: start=0, step=1, limit=4
    $region2: #{tpu_custom_call.1} parent=1 // loop_pre_header
      _
    $region3: #{tpu_custom_call.1} parent=1 // loop_header
      %s15 = sphi 0, %s19
      %p16 = scmp.ge.s32.totalorder %s15, 4
      %s25 = sphi 0, %s27
      %s28 = sphi 0, %s25
      %s29 = sphi 0, %s28
      %s45 = sphi 0, %s29
      %s49 = sphi 0, %s49
      %s51 = sphi 0, %s49
      %s52 = sphi 0, %s51
      %s66 = sphi 0, %s52
      %s70 = sphi 0, %s70
      %s72 = sphi 0, %s70
      %s73 = sphi 0, %s72
      %s87 = sphi 0, %s73
      %s91 = sphi 0, %s91
      %s93 = sphi 0, %s91
      %s94 = sphi 0, %s93
      %s108 = sphi 0, %s94
      %s112 = sphi 0, %s112
      %s114 = sphi 0, %s112
      %s115 = sphi 0, %s114
      %s129 = sphi 0, %s115
      %s133 = sphi 0, %s133
      %s135 = sphi 0, %s133
      %s136 = sphi 0, %s135
      %s150 = sphi 0, %s136
      %s156 = sphi 0, %s158
      %s159 = sphi 0, %s156
      %s160 = sphi 0, %s159
      %s176 = sphi 0, %s160
    $region4: #{tpu_custom_call.1} parent=1 // loop_header_branch
      %18 = sbr.rel (%p16) target = $region8
    $region5: #{tpu_custom_call.1} parent=1 // loop_body
      %s20 = ssub.s32 %s15, 1
      %s21 = ssub.s32 %s15, 2
      %s22 = sadd.s32 %s15, 1
      %s23 = ssub.s32 %s15, %s22
      %p24 = scmp.eq.s32.totalorder %s23, 0
      %s26 = sadd.s32 %s25, 1
      %s27 = scalar_select %p24, %s25, %s26
      %p30 = pneg %p24
      %p31 = scmp.eq.s32.totalorder %s15, 1
      %p32 = por %p30, %p31
      %p33 = scmp.ne.s32.totalorder %s25, %s28
      %p34 = scmp.eq.s32.totalorder %s15, 0
      %p35 = por %p33, %p34
      %p36 = scmp.ne.s32.totalorder %s25, %s28
      %p37 = scmp.eq.s32.totalorder %s20, 1
      %p38 = por %p36, %p37
      %p39 = scmp.ne.s32.totalorder %s28, %s29
      %p40 = scmp.eq.s32.totalorder %s20, 0
      %p41 = por %p39, %p40
      %p42 = scmp.ne.s32.totalorder %s28, %s29
      %p43 = scmp.eq.s32.totalorder %s21, 1
      %p44 = por %p42, %p43
      %p46 = scmp.ne.s32.totalorder %s29, %s45
      %p47 = scmp.eq.s32.totalorder %s21, 0
      %p48 = por %p46, %p47
      %s50 = sadd.s32 %s49, 1
      %p53 = scmp.eq.s32.totalorder %s15, 1
      %p54 = scmp.ne.s32.totalorder %s49, %s51
      %p55 = scmp.eq.s32.totalorder %s15, 0
      %p56 = por %p54, %p55
      %p57 = scmp.ne.s32.totalorder %s49, %s51
      %p58 = scmp.eq.s32.totalorder %s20, 1
      %p59 = por %p57, %p58
      %p60 = scmp.ne.s32.totalorder %s51, %s52
      %p61 = scmp.eq.s32.totalorder %s20, 0
      %p62 = por %p60, %p61
      %p63 = scmp.ne.s32.totalorder %s51, %s52
      %p64 = scmp.eq.s32.totalorder %s21, 1
      %p65 = por %p63, %p64
      %p67 = scmp.ne.s32.totalorder %s52, %s66
      %p68 = scmp.eq.s32.totalorder %s21, 0
      %p69 = por %p67, %p68
      %s71 = sadd.s32 %s70, 1
      %p74 = scmp.eq.s32.totalorder %s15, 1
      %p75 = scmp.ne.s32.totalorder %s70, %s72
      %p76 = scmp.eq.s32.totalorder %s15, 0
      %p77 = por %p75, %p76
      %p78 = scmp.ne.s32.totalorder %s70, %s72
      %p79 = scmp.eq.s32.totalorder %s20, 1
      %p80 = por %p78, %p79
      %p81 = scmp.ne.s32.totalorder %s72, %s73
      %p82 = scmp.eq.s32.totalorder %s20, 0
      %p83 = por %p81, %p82
      %p84 = scmp.ne.s32.totalorder %s72, %s73
      %p85 = scmp.eq.s32.totalorder %s21, 1
      %p86 = por %p84, %p85
      %p88 = scmp.ne.s32.totalorder %s73, %s87
      %p89 = scmp.eq.s32.totalorder %s21, 0
      %p90 = por %p88, %p89
      %s92 = sadd.s32 %s91, 1
      %p95 = scmp.eq.s32.totalorder %s15, 1
      %p96 = scmp.ne.s32.totalorder %s91, %s93
      %p97 = scmp.eq.s32.totalorder %s15, 0
      %p98 = por %p96, %p97
      %p99 = scmp.ne.s32.totalorder %s91, %s93
      %p100 = scmp.eq.s32.totalorder %s20, 1
      %p101 = por %p99, %p100
      %p102 = scmp.ne.s32.totalorder %s93, %s94
      %p103 = scmp.eq.s32.totalorder %s20, 0
      %p104 = por %p102, %p103
      %p105 = scmp.ne.s32.totalorder %s93, %s94
      %p106 = scmp.eq.s32.totalorder %s21, 1
      %p107 = por %p105, %p106
      %p109 = scmp.ne.s32.totalorder %s94, %s108
      %p110 = scmp.eq.s32.totalorder %s21, 0
      %p111 = por %p109, %p110
      %s113 = sadd.s32 %s112, 1
      %p116 = scmp.eq.s32.totalorder %s15, 1
      %p117 = scmp.ne.s32.totalorder %s112, %s114
      %p118 = scmp.eq.s32.totalorder %s15, 0
      %p119 = por %p117, %p118
      %p120 = scmp.ne.s32.totalorder %s112, %s114
      %p121 = scmp.eq.s32.totalorder %s20, 1
      %p122 = por %p120, %p121
      %p123 = scmp.ne.s32.totalorder %s114, %s115
      %p124 = scmp.eq.s32.totalorder %s20, 0
      %p125 = por %p123, %p124
      %p126 = scmp.ne.s32.totalorder %s114, %s115
      %p127 = scmp.eq.s32.totalorder %s21, 1
      %p128 = por %p126, %p127
      %p130 = scmp.ne.s32.totalorder %s115, %s129
      %p131 = scmp.eq.s32.totalorder %s21, 0
      %p132 = por %p130, %p131
      %s134 = sadd.s32 %s133, 1
      %p137 = scmp.eq.s32.totalorder %s15, 1
      %p138 = scmp.ne.s32.totalorder %s133, %s135
      %p139 = scmp.eq.s32.totalorder %s15, 0
      %p140 = por %p138, %p139
      %p141 = scmp.ne.s32.totalorder %s133, %s135
      %p142 = scmp.eq.s32.totalorder %s20, 1
      %p143 = por %p141, %p142
      %p144 = scmp.ne.s32.totalorder %s135, %s136
      %p145 = scmp.eq.s32.totalorder %s20, 0
      %p146 = por %p144, %p145
      %p147 = scmp.ne.s32.totalorder %s135, %s136
      %p148 = scmp.eq.s32.totalorder %s21, 1
      %p149 = por %p147, %p148
      %p151 = scmp.ne.s32.totalorder %s136, %s150
      %p152 = scmp.eq.s32.totalorder %s21, 0
      %p153 = por %p151, %p152
      %s154 = ssub.s32 %s15, %s22
      %p155 = scmp.eq.s32.totalorder %s154, 0
      %s157 = sadd.s32 %s156, 1
      %s158 = scalar_select %p155, %s156, %s157
      %p161 = pneg %p155
      %p162 = scmp.eq.s32.totalorder %s15, 1
      %p163 = por %p161, %p162
      %p164 = scmp.ne.s32.totalorder %s156, %s159
      %p165 = scmp.eq.s32.totalorder %s15, 0
      %p166 = por %p164, %p165
      %p167 = scmp.ne.s32.totalorder %s156, %s159
      %p168 = scmp.eq.s32.totalorder %s20, 1
      %p169 = por %p167, %p168
      %p170 = scmp.ne.s32.totalorder %s159, %s160
      %p171 = scmp.eq.s32.totalorder %s20, 0
      %p172 = por %p170, %p171
      %p173 = scmp.ne.s32.totalorder %s159, %s160
      %p174 = scmp.eq.s32.totalorder %s21, 1
      %p175 = por %p173, %p174
      %p177 = scmp.ne.s32.totalorder %s160, %s176
      %p178 = scmp.eq.s32.totalorder %s21, 0
      %p179 = por %p177, %p178
      %p180 = scmp.le.s32.totalorder 1, %s15
      %p181 = scmp.lt.s32.totalorder %s15, 3
      %p182 = pnand %p180, %p181
      %p183 = pneg %p182
      // Predicated region
      $region9: #{tpu_custom_call.1} parent=5 // pred_check
        _
      $region10: #{tpu_custom_call.1} parent=5 // pred_check_branch
        %185 = sbr.rel (%p182) target = $region12
      $region11: #{tpu_custom_call.1} parent=5 // pred_region
        %s186 = ssub.s32 %s15, 1
        // Predicated region
        $region13: #{tpu_custom_call.1} parent=11 // pred_check
          %p187 = pneg %p62
        $region14: #{tpu_custom_call.1} parent=11 // pred_check_branch
          %189 = sbr.rel (%p187) target = $region16
        $region15: #{tpu_custom_call.1} parent=11 // pred_region
          _
        $region16: #{tpu_custom_call.1} parent=11 // pred_fallthru
          _
        // Predicated region
        $region17: #{tpu_custom_call.1} parent=11 // pred_check
          %p190 = pneg %p83
        $region18: #{tpu_custom_call.1} parent=11 // pred_check_branch
          %192 = sbr.rel (%p190) target = $region20
        $region19: #{tpu_custom_call.1} parent=11 // pred_region
          _
        $region20: #{tpu_custom_call.1} parent=11 // pred_fallthru
          _
        // Predicated region
        $region21: #{tpu_custom_call.1} parent=11 // pred_check
          %p193 = pneg %p104
        $region22: #{tpu_custom_call.1} parent=11 // pred_check_branch
          %195 = sbr.rel (%p193) target = $region24
        $region23: #{tpu_custom_call.1} parent=11 // pred_region
          _
        $region24: #{tpu_custom_call.1} parent=11 // pred_fallthru
          _
        // Predicated region
        $region25: #{tpu_custom_call.1} parent=11 // pred_check
          %p196 = pneg %p125
        $region26: #{tpu_custom_call.1} parent=11 // pred_check_branch
          %198 = sbr.rel (%p196) target = $region28
        $region27: #{tpu_custom_call.1} parent=11 // pred_region
          _
        $region28: #{tpu_custom_call.1} parent=11 // pred_fallthru
          _
        // Predicated region
        $region29: #{tpu_custom_call.1} parent=11 // pred_check
          %p199 = pneg %p146
        $region30: #{tpu_custom_call.1} parent=11 // pred_check_branch
          %201 = sbr.rel (%p199) target = $region32
        $region31: #{tpu_custom_call.1} parent=11 // pred_region
          _
        $region32: #{tpu_custom_call.1} parent=11 // pred_fallthru
          _
      $region12: #{tpu_custom_call.1} parent=5 // pred_fallthru
        _
      %p202 = scmp.lt.s32.totalorder %s15, 2
      // Predicated region
      $region33: #{tpu_custom_call.1} parent=5 // pred_check
        %p203 = pneg %p202
      $region34: #{tpu_custom_call.1} parent=5 // pred_check_branch
        %205 = sbr.rel (%p203) target = $region36
      $region35: #{tpu_custom_call.1} parent=5 // pred_region
        // Predicated region
        $region37: #{tpu_custom_call.1} parent=35 // pred_check
          %p206 = pneg %p35
        $region38: #{tpu_custom_call.1} parent=35 // pred_check_branch
          %208 = sbr.rel (%p206) target = $region40
        $region39: #{tpu_custom_call.1} parent=35 // pred_region
          %s209 = smul.u32 16, %s15
          %p210 = scmp.lt.s32.totalorder %s209, 31
          %s211 = scalar_select %p210, %s209, 31
          %s212 = smul.addr %s211, 4
          %s213 = scalar_lea.vmem %s0, %s212
          %s214 = smul.u32 16, %s15
        $region40: #{tpu_custom_call.1} parent=35 // pred_fallthru
          _
      $region36: #{tpu_custom_call.1} parent=5 // pred_fallthru
        _
      %p215 = scmp.le.s32.totalorder 1, %s15
      %p216 = scmp.lt.s32.totalorder %s15, 3
      %p217 = pnand %p215, %p216
      %p218 = pneg %p217
      // Predicated region
      $region41: #{tpu_custom_call.1} parent=5 // pred_check
        _
      $region42: #{tpu_custom_call.1} parent=5 // pred_check_branch
        %220 = sbr.rel (%p217) target = $region44
      $region43: #{tpu_custom_call.1} parent=5 // pred_region
        %s221 = ssub.s32 %s15, 1
        %s222 = smul.u32 16, %s20
        %p223 = scmp.lt.s32.totalorder %s222, 31
        %s224 = scalar_select %p223, %s222, 31
        %s225 = smul.addr %s224, 4
        %s226 = scalar_lea.vmem %s0, %s225
        %p227 = pneg %p41
        %p228 = pneg %p38
        %p229 = pneg %p62
        %p230 = pneg %p59
        %p231 = pneg %p83
        %p232 = pneg %p80
        %p233 = pneg %p104
        %p234 = pneg %p101
        %p235 = pneg %p125
        %p236 = pneg %p122
        %p237 = pneg %p146
        %p238 = pneg %p143
        %p239 = pneg %p172
        %p240 = pneg %p169
        %s241 = sand.u32 %s159, 1
        %s242 = scalar_lea.sflag [#allocation3], %s241
        %s243 = sand.u32 %s159, 1
        %s244 = smul.addr %s243, 8
        %s245 = scalar_lea.vmem [#allocation2], %s244
        %s246 = smul.u32 16, %s20
        %p247 = scmp.lt.s32.totalorder %s246, 31
        %s248 = scalar_select %p247, %s246, 31
        %s249 = smul.addr %s248, 4
        %s250 = scalar_lea.vmem %s0, %s249
        %s251 = smul.u32 16, %s20
        %v253 = vld [vmem:[%s250] sm:$0xf]
        %v254 = vld [vmem:[%s250 + $0x4] sm:$0xf]
        %v255 = vld [vmem:[%s250 + $0x8] sm:$0xf]
        %v256 = vld [vmem:[%s250 + $0xc] sm:$0xf]
        %v257 = vld [vmem:[%s250 + $0x10] sm:$0xf]
        %v258 = vld [vmem:[%s250 + $0x14] sm:$0xf]
        %v259 = vld [vmem:[%s250 + $0x18] sm:$0xf]
        %v260 = vld [vmem:[%s250 + $0x1c] sm:$0xf]
        %v261 = vld [vmem:[%s250 + $0x20] sm:$0xf]
        %v262 = vld [vmem:[%s250 + $0x24] sm:$0xf]
        %v263 = vld [vmem:[%s250 + $0x28] sm:$0xf]
        %v264 = vld [vmem:[%s250 + $0x2c] sm:$0xf]
        %v265 = vld [vmem:[%s250 + $0x30] sm:$0xf]
        %v266 = vld [vmem:[%s250 + $0x34] sm:$0xf]
        %v267 = vld [vmem:[%s250 + $0x38] sm:$0xf]
        %v268 = vld [vmem:[%s250 + $0x3c] sm:$0xf]
        %v269 = vld [vmem:[%s1] sm:$0xf]
        %v270 = vld [vmem:[%s1 + $0x4] sm:$0xf]
        %v271 = vld [vmem:[%s1 + $0x8] sm:$0xf]
        %v272 = vld [vmem:[%s1 + $0xc] sm:$0xf]
        %v273 = vld [vmem:[%s1 + $0x10] sm:$0xf]
        %v274 = vld [vmem:[%s1 + $0x14] sm:$0xf]
        %v275 = vld [vmem:[%s1 + $0x18] sm:$0xf]
        %v276 = vld [vmem:[%s1 + $0x1c] sm:$0xf]
        %v293 = vunpack.c.l.b16 %v253
        %v294 = vunpack.c.l.b16 %v254
        %v295 = vunpack.c.l.b16 %v255
        %v296 = vunpack.c.l.b16 %v256
        %v297 = vunpack.c.l.b16 %v257
        %v298 = vunpack.c.l.b16 %v258
        %v299 = vunpack.c.l.b16 %v259
        %v300 = vunpack.c.l.b16 %v260
        %v301 = vunpack.c.l.b16 %v261
        %v302 = vunpack.c.l.b16 %v262
        %v303 = vunpack.c.l.b16 %v263
        %v304 = vunpack.c.l.b16 %v264
        %v305 = vunpack.c.l.b16 %v265
        %v306 = vunpack.c.l.b16 %v266
        %v307 = vunpack.c.l.b16 %v267
        %v308 = vunpack.c.l.b16 %v268
        %v309 = vpack.c.b16 %v294, %v293
        %v310 = vpack.c.b16 %v296, %v295
        %v311 = vpack.c.b16 %v298, %v297
        %v312 = vpack.c.b16 %v300, %v299
        %v313 = vpack.c.b16 %v302, %v301
        %v314 = vpack.c.b16 %v304, %v303
        %v315 = vpack.c.b16 %v306, %v305
        %v316 = vpack.c.b16 %v308, %v307
        %v325 = vunpack.c.l.b16 %v269
        %v326 = vunpack.c.l.b16 %v270
        %v327 = vunpack.c.l.b16 %v271
        %v328 = vunpack.c.l.b16 %v272
        %v329 = vunpack.c.l.b16 %v273
        %v330 = vunpack.c.l.b16 %v274
        %v331 = vunpack.c.l.b16 %v275
        %v332 = vunpack.c.l.b16 %v276
        %v333 = vpack.c.b16 %v326, %v325
        %v334 = vpack.c.b16 %v328, %v327
        %v335 = vpack.c.b16 %v330, %v329
        %v336 = vpack.c.b16 %v332, %v331
        %vm341 = vcmask 523264
        %v343 = vsel %vm341, %v309, 0
        %v346 = vsel %vm341, %v310, 0
        %v349 = vsel %vm341, %v311, 0
        %v352 = vsel %vm341, %v312, 0
        %v355 = vsel %vm341, %v313, 0
        %v358 = vsel %vm341, %v314, 0
        %v361 = vsel %vm341, %v315, 0
        %v364 = vsel %vm341, %v316, 0
        %366 = vmatpush.bf16.msra.mxu0 0
        %367 = vmatpush.bf16.msra.mxu0 0
        %368 = vmatpush.bf16.msra.mxu0 0
        %369 = vmatpush.bf16.msra.mxu0 0
        %370 = vmatpush.bf16.msra.mxu0 %v336
        %371 = vmatpush.bf16.msra.mxu0 %v335
        %372 = vmatpush.bf16.msra.mxu0 %v334
        %373 = vmatpush.bf16.msra.mxu0 %v333
        %374 = vmatmul.bf16.gmra.mxu0 %v343
        %v375 = vpop.f32.mrf.mxu0
        %v376 = vadd.f32 0.0, %v375
        %v377 = vpop.f32.mrf.mxu0
        %v378 = vadd.f32 0.0, %v377
        %379 = vmatmul.bf16.gmra.mxu0 %v346
        %v380 = vpop.f32.mrf.mxu0
        %v381 = vadd.f32 0.0, %v380
        %v382 = vpop.f32.mrf.mxu0
        %v383 = vadd.f32 0.0, %v382
        %384 = vmatmul.bf16.gmra.mxu0 %v349
        %v385 = vpop.f32.mrf.mxu0
        %v386 = vadd.f32 0.0, %v385
        %v387 = vpop.f32.mrf.mxu0
        %v388 = vadd.f32 0.0, %v387
        %389 = vmatmul.bf16.gmra.mxu0 %v352
        %v390 = vpop.f32.mrf.mxu0
        %v391 = vadd.f32 0.0, %v390
        %v392 = vpop.f32.mrf.mxu0
        %v393 = vadd.f32 0.0, %v392
        %394 = vmatmul.bf16.gmra.mxu0 %v355
        %v395 = vpop.f32.mrf.mxu0
        %v396 = vadd.f32 0.0, %v395
        %v397 = vpop.f32.mrf.mxu0
        %v398 = vadd.f32 0.0, %v397
        %399 = vmatmul.bf16.gmra.mxu0 %v358
        %v400 = vpop.f32.mrf.mxu0
        %v401 = vadd.f32 0.0, %v400
        %v402 = vpop.f32.mrf.mxu0
        %v403 = vadd.f32 0.0, %v402
        %404 = vmatmul.bf16.gmra.mxu0 %v361
        %v405 = vpop.f32.mrf.mxu0
        %v406 = vadd.f32 0.0, %v405
        %v407 = vpop.f32.mrf.mxu0
        %v408 = vadd.f32 0.0, %v407
        %409 = vmatmul.bf16.gmra.mxu0 %v364
        %v410 = vpop.f32.mrf.mxu0
        %v411 = vadd.f32 0.0, %v410
        %v412 = vpop.f32.mrf.mxu0
        %v413 = vadd.f32 0.0, %v412
        %414 = vdwg.mxu0
        %v415 = vlaneseq
        %v416 = vshrl.u32 %v415, 7
        %v417 = vadd.s32 %v416, 8
        %v418 = vld [vmem:[%s3] sm:$0x1]
        %v419 = vperm.slane %v418, 0
        %vm420 = vcmp.lt.s32.totalorder %v416, %v419
        %vm421 = vcmp.lt.s32.totalorder %v417, %v419
        %v422 = vsel %vm420, 1, 0
        %v423 = vsel %vm421, 1, 0
        %vm424 = vcmp.eq.s32.totalorder %v422, 1
        %vm425 = vcmp.eq.s32.totalorder %v423, 1
        %v426 = vsel %vm424, %v376, -1e+30
        %v427 = vsel %vm425, %v378, -1e+30
        %v428 = vsel %vm424, %v381, -1e+30
        %v429 = vsel %vm425, %v383, -1e+30
        %v430 = vsel %vm424, %v386, -1e+30
        %v431 = vsel %vm425, %v388, -1e+30
        %v432 = vsel %vm424, %v391, -1e+30
        %v433 = vsel %vm425, %v393, -1e+30
        %v434 = vsel %vm424, %v396, -1e+30
        %v435 = vsel %vm425, %v398, -1e+30
        %v436 = vsel %vm424, %v401, -1e+30
        %v437 = vsel %vm425, %v403, -1e+30
        %v438 = vsel %vm424, %v406, -1e+30
        %v439 = vsel %vm425, %v408, -1e+30
        %v440 = vsel %vm424, %v411, -1e+30
        %v441 = vsel %vm425, %v413, -1e+30
        %v442 = vmax.f32 %v426, %v427
        %v443 = vrot.slane %v442, 4
        %v444 = vmax.f32 %v442, %v443
        %v445 = vrot.slane %v444, 2
        %v446 = vmax.f32 %v444, %v445
        %v447 = vrot.slane %v446, 1
        %v448 = vmax.f32 %v446, %v447
        %v449 = vmax.f32 %v428, %v429
        %v450 = vrot.slane %v449, 4
        %v451 = vmax.f32 %v449, %v450
        %v452 = vrot.slane %v451, 2
        %v453 = vmax.f32 %v451, %v452
        %v454 = vrot.slane %v453, 1
        %v455 = vmax.f32 %v453, %v454
        %v456 = vmax.f32 %v430, %v431
        %v457 = vrot.slane %v456, 4
        %v458 = vmax.f32 %v456, %v457
        %v459 = vrot.slane %v458, 2
        %v460 = vmax.f32 %v458, %v459
        %v461 = vrot.slane %v460, 1
        %v462 = vmax.f32 %v460, %v461
        %v463 = vmax.f32 %v432, %v433
        %v464 = vrot.slane %v463, 4
        %v465 = vmax.f32 %v463, %v464
        %v466 = vrot.slane %v465, 2
        %v467 = vmax.f32 %v465, %v466
        %v468 = vrot.slane %v467, 1
        %v469 = vmax.f32 %v467, %v468
        %v470 = vmax.f32 %v434, %v435
        %v471 = vrot.slane %v470, 4
        %v472 = vmax.f32 %v470, %v471
        %v473 = vrot.slane %v472, 2
        %v474 = vmax.f32 %v472, %v473
        %v475 = vrot.slane %v474, 1
        %v476 = vmax.f32 %v474, %v475
        %v477 = vmax.f32 %v436, %v437
        %v478 = vrot.slane %v477, 4
        %v479 = vmax.f32 %v477, %v478
        %v480 = vrot.slane %v479, 2
        %v481 = vmax.f32 %v479, %v480
        %v482 = vrot.slane %v481, 1
        %v483 = vmax.f32 %v481, %v482
        %v484 = vmax.f32 %v438, %v439
        %v485 = vrot.slane %v484, 4
        %v486 = vmax.f32 %v484, %v485
        %v487 = vrot.slane %v486, 2
        %v488 = vmax.f32 %v486, %v487
        %v489 = vrot.slane %v488, 1
        %v490 = vmax.f32 %v488, %v489
        %v491 = vmax.f32 %v440, %v441
        %v492 = vrot.slane %v491, 4
        %v493 = vmax.f32 %v491, %v492
        %v494 = vrot.slane %v493, 2
        %v495 = vmax.f32 %v493, %v494
        %v496 = vrot.slane %v495, 1
        %v497 = vmax.f32 %v495, %v496
        %v498 = vld [vmem:[%s2] sm:$0x1]
        %v500 = vperm.slane %v498, 0
        %v502 = vadd.f32 %v448, %v500
        %v503 = vadd.f32 %v455, %v500
        %v504 = vadd.f32 %v462, %v500
        %v505 = vadd.f32 %v469, %v500
        %v506 = vadd.f32 %v476, %v500
        %v507 = vadd.f32 %v483, %v500
        %v508 = vadd.f32 %v490, %v500
        %v509 = vadd.f32 %v497, %v500
        %v510 = vmax.f32 %v502, 0.0
        %v511 = vmax.f32 %v503, 0.0
        %v512 = vmax.f32 %v504, 0.0
        %v513 = vmax.f32 %v505, 0.0
        %v514 = vmax.f32 %v506, 0.0
        %v515 = vmax.f32 %v507, 0.0
        %v516 = vmax.f32 %v508, 0.0
        %v517 = vmax.f32 %v509, 0.0
        %v518 = vld [vmem:[%s4] sm:$0xff]
        %v519 = vld [vmem:[%s4 + $0x8] sm:$0xff]
        %v520 = vld [vmem:[%s4 + $0x10] sm:$0xff]
        %v521 = vld [vmem:[%s4 + $0x18] sm:$0xff]
        %v522 = vld [vmem:[%s4 + $0x20] sm:$0xff]
        %v523 = vld [vmem:[%s4 + $0x28] sm:$0xff]
        %v524 = vld [vmem:[%s4 + $0x30] sm:$0xff]
        %v525 = vld [vmem:[%s4 + $0x38] sm:$0xff]
        %v526 = vld [vmem:[%s4 + $0x40] sm:$0xff]
        %v527 = vld [vmem:[%s4 + $0x48] sm:$0xff]
        %v528 = vld [vmem:[%s4 + $0x50] sm:$0xff]
        %v529 = vld [vmem:[%s4 + $0x58] sm:$0xff]
        %v530 = vld [vmem:[%s4 + $0x60] sm:$0xff]
        %v531 = vld [vmem:[%s4 + $0x68] sm:$0xff]
        %v532 = vld [vmem:[%s4 + $0x70] sm:$0xff]
        %v533 = vld [vmem:[%s4 + $0x78] sm:$0xff]
        %v534 = vld [vmem:[%s5] sm:$0x1]
        %v536 = vperm.slane %v534, 0
        %v546 = vrot.slane %v511, 7
        %vm547 = vcmask 1041409
        %v548 = vsel %vm547, %v546, %v510
        %v549 = vrot.slane %v512, 6
        %vm550 = vcmask 1042434
        %v551 = vsel %vm550, %v549, %v548
        %v552 = vrot.slane %v513, 5
        %vm553 = vcmask 1043459
        %v554 = vsel %vm553, %v552, %v551
        %v555 = vrot.slane %v514, 4
        %vm556 = vcmask 1044484
        %v557 = vsel %vm556, %v555, %v554
        %v558 = vrot.slane %v515, 3
        %vm559 = vcmask 1045509
        %v560 = vsel %vm559, %v558, %v557
        %v561 = vrot.slane %v516, 2
        %vm562 = vcmask 1046534
        %v563 = vsel %vm562, %v561, %v560
        %v564 = vrot.slane %v517, 1
        %vm565 = vcmask 1047559
        %v566 = vsel %vm565, %v564, %v563
        %568 = vmatpush.msra.mxu0 %v533
        %569 = vmatpush.msra.mxu0 %v532
        %570 = vmatpush.msra.mxu0 %v531
        %571 = vmatpush.msra.mxu0 %v530
        %572 = vmatpush.msra.mxu0 %v529
        %573 = vmatpush.msra.mxu0 %v528
        %574 = vmatpush.msra.mxu0 %v527
        %575 = vmatpush.msra.mxu0 %v526
        %576 = vmatpush.msra.mxu0 %v525
        %577 = vmatpush.msra.mxu0 %v524
        %578 = vmatpush.msra.mxu0 %v523
        %579 = vmatpush.msra.mxu0 %v522
        %580 = vmatpush.msra.mxu0 %v521
        %581 = vmatpush.msra.mxu0 %v520
        %582 = vmatpush.msra.mxu0 %v519
        %583 = vmatpush.msra.mxu0 %v518
        %584 = vmatmul.f32.gmra.mxu0 %v566
        %v585 = vpop.f32.mrf.mxu0
        %v586 = vadd.f32 %v536, %v585
        %587 = vdwg.mxu0
        %588 = vst [vmem:[%s245] sm:$0xff] %v586
        %s589 = sand.u32 %s159, 1
        %s590 = scalar_lea.sflag [#allocation3], %s589
        %s591 = sand.u32 %s159, 1
        %s592 = smul.addr %s591, 8
        %s593 = scalar_lea.vmem [#allocation2], %s592
        // Predicated region
        $region45: #{tpu_custom_call.1} parent=43 // pred_check
          %p594 = pneg %p169
        $region46: #{tpu_custom_call.1} parent=43 // pred_check_branch
          %596 = sbr.rel (%p594) target = $region48
        $region47: #{tpu_custom_call.1} parent=43 // pred_region
          %598 = vsyncadd %s590, 0
          %s599 = smul.addr %s20, 8
          %s600 = scalar_lea.hbm %s6, %s599
          %s602 = sshll.u32 %s593, 4
          %s603 = int_to_ptr.vmem [resolvable:$true] %s602
          %s604 = sshll.u32 %s600, 4
          %s605 = int_to_ptr.hbm [resolvable:$true] %s604
          %607 = dma.vmem_to_hbm [thread:$0]  %s603, 128, %s605, %s590
        $region48: #{tpu_custom_call.1} parent=43 // pred_fallthru
          _
      $region44: #{tpu_custom_call.1} parent=5 // pred_fallthru
        _
      %p608 = scmp.le.s32.totalorder 2, %s15
      // Predicated region
      $region49: #{tpu_custom_call.1} parent=5 // pred_check
        %p609 = pneg %p608
      $region50: #{tpu_custom_call.1} parent=5 // pred_check_branch
        %611 = sbr.rel (%p609) target = $region52
      $region51: #{tpu_custom_call.1} parent=5 // pred_region
        %s612 = ssub.s32 %s15, 2
        // Predicated region
        $region53: #{tpu_custom_call.1} parent=51 // pred_check
          %p613 = pneg %p175
        $region54: #{tpu_custom_call.1} parent=51 // pred_check_branch
          %615 = sbr.rel (%p613) target = $region56
        $region55: #{tpu_custom_call.1} parent=51 // pred_region
          %s616 = sand.u32 %s160, 1
          %s617 = scalar_lea.sflag [#allocation3], %s616
          %s618 = sand.u32 %s160, 1
          %s619 = smul.addr %s618, 8
          %s620 = scalar_lea.vmem [#allocation2], %s619
          %622 = dma.done %s617, 128
        $region56: #{tpu_custom_call.1} parent=51 // pred_fallthru
          _
      $region52: #{tpu_custom_call.1} parent=5 // pred_fallthru
        _
    $region6: #{tpu_custom_call.1} parent=1 // loop_footer
      %s19 = sadd.s32 1, %s15
    $region7: #{tpu_custom_call.1} parent=1 // loop_footer_branch
      %14 = sbr.rel target = $region3
    $region8: #{tpu_custom_call.1} parent=1 // loop_exit
      _
    %623 = vsyncpa [#allocation3], 1
    %s624 = scalar_lea.sflag [#allocation3], 1
    %625 = vsyncpa %s624, 1

</llo_original>
